<compile_context>
chip_gen: v7x
topology: tpu7x:2x2x1
jax: 0.10.0
libtpu: 0.0.40
codegen_flags: <defaults>
</compile_context>

<pallas_src>
import math
import functools

import jax
import jax.numpy as jnp
from jax.experimental import pallas as pl
from jax.experimental.pallas import tpu as pltpu


def _fused_gw_mlp_kernel(*refs, num_layers: int, mxu_dtype):
    # refs = (x_ref, W_0, b_0, ..., W_{L-1}, b_{L-1}, o_ref)
    x_ref = refs[0]
    o_ref = refs[-1]
    wb = refs[1:-1]

    y = x_ref[...]  # (Kb, tb, D), already in mxu_dtype
    for i in range(num_layers):
        w = wb[2 * i][...]        # (Kb, d_i, o_i), mxu_dtype
        b = wb[2 * i + 1][...]    # (Kb, 1,  o_i), float32
        # Batched per-class matmul on the MXU, f32 accumulation.
        y = jnp.einsum('kbd,kdo->kbo', y, w,
                       preferred_element_type=jnp.float32)
        # GroupWiseLinear "bias" is a per-class multiplicative scale
        # (torch.einsum('bko,ko->bko')); keep it in f32 on the VPU.
        y = y * b
        if i < num_layers - 1:
            y = jnp.maximum(y, 0.0)     # ReLU between layers
            y = y.astype(mxu_dtype)     # feed the next matmul
    o_ref[...] = y.astype(o_ref.dtype)


def _pick_batch_tile(B, cap=256):
    """Return (tile, padded_B).

    Full batch if small (equals full dim -> no (8,128) constraint); otherwise
    the largest multiple-of-8 divisor <= cap; otherwise pad the batch up to a
    multiple of `cap` (cap is itself a multiple of 8) and tile by `cap`.
    """
    if B <= cap:
        return B, B
    for t in range(cap, 7, -1):
        if B % t == 0 and t % 8 == 0:
            return t, B
    Bp = ((B + cap - 1) // cap) * cap
    return cap, Bp


def _pick_class_tile(K, tb, layer_dims, mxu_itemsize, out_itemsize,
                     budget_bytes=12 * 1024 * 1024):
    """Largest divisor of K whose double-buffered block footprint fits the budget."""
    D = layer_dims[0][0]
    O = layer_dims[-1][1]

    def footprint(kb):
        f = kb * tb * D * mxu_itemsize               # x block
        for d_i, o_i in layer_dims:
            f += kb * d_i * o_i * mxu_itemsize       # weight block
            f += kb * o_i * 4                        # bias block (f32)
        f += kb * tb * O * out_itemsize              # output block
        return 2 * f                                 # double-buffered

    best = 1
    for kb in range(1, K + 1):
        if K % kb == 0 and footprint(kb) <= budget_bytes:
            best = kb
    return best


def groupwise_mlp_forward(x, params, *, mxu_dtype=None):
    """x: (b, k, d) or (c0, b, k, d).  Matches GroupwiseMLP.forward.

    mxu_dtype: dtype fed to the MXU (e.g. jnp.bfloat16 to halve HBM weight
    traffic); accumulation, bias scale and ReLU stay in float32.  Defaults to
    the input dtype.
    """
    out_dtype = x.dtype
    resize_flag = x.ndim == 4
    if resize_flag:
        c0, b0, k0, d0 = x.shape
        x = x.reshape(c0 * b0, k0, d0)
    B, K, D = x.shape
    num_layers = len(params)
    if mxu_dtype is None:
        mxu_dtype = x.dtype
    mxu_dtype = jnp.dtype(mxu_dtype)

    layer_dims = []
    for (W, bvec) in params:
        Kw, d_i, o_i = W.shape
        assert Kw == K and bvec.shape == (K, o_i)
        layer_dims.append((d_i, o_i))
    assert layer_dims[0][0] == D
    O_last = layer_dims[-1][1]

    # Tile sizes: class dim is a leading block dim (no alignment constraint);
    # the batch tile must be the full (possibly padded) batch or a multiple of 8.
    tb, Bp = _pick_batch_tile(B)
    Kb = _pick_class_tile(K, tb, layer_dims, mxu_dtype.itemsize,
                          jnp.dtype(out_dtype).itemsize)
    nk, nb = K // Kb, Bp // tb
    # NOTE: D/O are never tiled here; for very large per-class weights a
    # reduction grid axis with a VMEM accumulator would be needed.

    # Single layout change for the whole stack: (B, K, D) -> (K, B, D).
    xt = jnp.transpose(x, (1, 0, 2)).astype(mxu_dtype)
    if Bp != B:
        xt = jnp.pad(xt, ((0, 0), (0, Bp - B), (0, 0)))

    args = [xt]
    in_specs = [pl.BlockSpec((Kb, tb, D), lambda kj, bi: (kj, bi, 0))]
    for (W, bvec), (d_i, o_i) in zip(params, layer_dims):
        args.append(W.astype(mxu_dtype))                       # bf16 weights halve HBM bytes
        args.append(bvec.reshape(K, 1, o_i).astype(jnp.float32))
        in_specs.append(pl.BlockSpec((Kb, d_i, o_i), lambda kj, bi: (kj, 0, 0)))
        in_specs.append(pl.BlockSpec((Kb, 1, o_i), lambda kj, bi: (kj, 0, 0)))

    flops = 2 * Bp * K * sum(d_i * o_i for d_i, o_i in layer_dims)
    bytes_accessed = (sum(int(a.size) * a.dtype.itemsize for a in args)
                      + K * Bp * O_last * jnp.dtype(out_dtype).itemsize)

    kernel = functools.partial(_fused_gw_mlp_kernel,
                               num_layers=num_layers, mxu_dtype=mxu_dtype)

    out_kbo = pl.pallas_call(
        kernel,
        out_shape=jax.ShapeDtypeStruct((K, Bp, O_last), out_dtype),
        grid=(nk, nb),  # batch tiles innermost -> weight blocks reused across them
        in_specs=in_specs,
        out_specs=pl.BlockSpec((Kb, tb, O_last), lambda kj, bi: (kj, bi, 0)),
        compiler_params=pltpu.CompilerParams(
            dimension_semantics=("parallel", "parallel"),
            vmem_limit_bytes=32 * 1024 * 1024),
        cost_estimate=pl.CostEstimate(flops=flops, transcendentals=0,
                                      bytes_accessed=bytes_accessed),
    )(*args)

    if Bp != B:
        out_kbo = out_kbo[:, :B, :]
    out = jnp.transpose(out_kbo, (1, 0, 2))  # back to (B, K, O)
    if resize_flag:
        out = out.reshape(c0, b0, k0, O_last)
    return out


def init_groupwise_mlp_params(key, num_class, input_dim, hidden_dim,
                              output_dim, num_layers):
    """Deterministic init mirroring GroupWiseLinear.reset_parameters:
    W ~ U(-stdv, stdv), b ~ U(-stdv, stdv) with stdv = 1/sqrt(output_dim)."""
    h = [hidden_dim] * (num_layers - 1)
    dims_in = [input_dim] + h
    dims_out = h + [output_dim]
    params = []
    for n, k in zip(dims_in, dims_out):
        stdv = 1.0 / math.sqrt(k)
        key, kw, kb = jax.random.split(key, 3)
        W = jax.random.uniform(kw, (num_class, n, k), jnp.float32, -stdv, stdv)
        b = jax.random.uniform(kb, (num_class, k), jnp.float32, -stdv, stdv)
        params.append((W, b))
    return params


def groupwise_mlp_reference(x, params):
    """Pure-JAX reference (mirrors the PyTorch einsums)."""
    resize_flag = x.ndim == 4
    if resize_flag:
        c0, b, k, d = x.shape
        x = x.reshape(c0 * b, k, d)
    num_layers = len(params)
    for i, (W, bias) in enumerate(params):
        x = jnp.einsum('bkd,kdo->bko', x, W)
        x = jnp.einsum('bko,ko->bko', x, bias)
        if i < num_layers - 1:
            x = jax.nn.relu(x)
    if resize_flag:
        x = x.reshape(c0, b, k, -1)
    return x


if __name__ == "__main__":
    num_class = 4
    input_dim = 16
    hidden_dim = 32
    output_dim = 8
    num_layers = 3

    key = jax.random.PRNGKey(0)
    key, kx = jax.random.split(key)
    # 4D input (c0, b, k, d) to exercise the flatten/reshape path.
    x = jax.random.normal(kx, (2, 2, num_class, input_dim), jnp.float32)

    params = init_groupwise_mlp_params(
        key, num_class, input_dim, hidden_dim, output_dim, num_layers)

    ref = groupwise_mlp_reference(x, params)

    # Full-precision run through the fused single-kernel forward.
    out = jax.block_until_ready(groupwise_mlp_forward(x, params))
    assert out.shape == (2, 2, num_class, output_dim), out.shape
    assert jnp.allclose(out, ref, rtol=1e-4, atol=1e-4), "f32 mismatch vs reference"

    # bf16 MXU operands (f32 accumulate + f32 bias/ReLU tail) -- the main
    # bandwidth knob; checked with a looser tolerance.
    out_bf16 = jax.block_until_ready(
        groupwise_mlp_forward(x, params, mxu_dtype=jnp.bfloat16))
    assert out_bf16.shape == out.shape
    assert jnp.allclose(out_bf16, ref, rtol=5e-2, atol=5e-2), "bf16 mismatch vs reference"

    # 3D input path (b, k, d).
    key, kx3 = jax.random.split(key)
    x3 = jax.random.normal(kx3, (4, num_class, input_dim), jnp.float32)
    out3 = jax.block_until_ready(groupwise_mlp_forward(x3, params))
    ref3 = groupwise_mlp_reference(x3, params)
    assert out3.shape == (4, num_class, output_dim), out3.shape
    assert jnp.allclose(out3, ref3, rtol=1e-4, atol=1e-4), "3D f32 mismatch vs reference"

    print("KERNEL_OK")
</pallas_src>

<mosaic_0001>
module attributes {stable_mosaic.version = 11 : i64} {
  func.func @_fused_gw_mlp_kernel(%arg0: i32, %arg1: i32, %arg2: memref<4x4x16xf32, #tpu.memory_space<vmem>>, %arg3: memref<4x16x32xf32, #tpu.memory_space<vmem>>, %arg4: memref<4x1x32xf32, #tpu.memory_space<vmem>>, %arg5: memref<4x32x32xf32, #tpu.memory_space<vmem>>, %arg6: memref<4x1x32xf32, #tpu.memory_space<vmem>>, %arg7: memref<4x32x8xf32, #tpu.memory_space<vmem>>, %arg8: memref<4x1x8xf32, #tpu.memory_space<vmem>>, %arg9: memref<4x4x8xf32, #tpu.memory_space<vmem>>) attributes {dimension_semantics = [#tpu.dimension_semantics<parallel>, #tpu.dimension_semantics<parallel>], iteration_bounds = array<i64: 1, 1>, scalar_prefetch = 0 : i64, scratch_operands = 0 : i64, tpu.core_type = #tpu.core_type<tc>, window_params = [{transform_indices = @transform_0, window_bounds = array<i64: 4, 4, 16>}, {transform_indices = @transform_1, window_bounds = array<i64: 4, 16, 32>}, {transform_indices = @transform_2, window_bounds = array<i64: 4, 1, 32>}, {transform_indices = @transform_3, window_bounds = array<i64: 4, 32, 32>}, {transform_indices = @transform_4, window_bounds = array<i64: 4, 1, 32>}, {transform_indices = @transform_5, window_bounds = array<i64: 4, 32, 8>}, {transform_indices = @transform_6, window_bounds = array<i64: 4, 1, 8>}, {transform_indices = @transform_7, window_bounds = array<i64: 4, 4, 8>}]} {
    %c0 = arith.constant 0 : index
    %c0_0 = arith.constant 0 : index
    %c0_1 = arith.constant 0 : index
    %0 = vector.load %arg2[%c0, %c0_0, %c0_1] : memref<4x4x16xf32, #tpu.memory_space<vmem>>, vector<4x4x16xf32>
    %c0_2 = arith.constant 0 : index
    %c0_3 = arith.constant 0 : index
    %c0_4 = arith.constant 0 : index
    %1 = vector.load %arg3[%c0_2, %c0_3, %c0_4] : memref<4x16x32xf32, #tpu.memory_space<vmem>>, vector<4x16x32xf32>
    %c0_5 = arith.constant 0 : index
    %c0_6 = arith.constant 0 : index
    %c0_7 = arith.constant 0 : index
    %2 = vector.load %arg4[%c0_5, %c0_6, %c0_7] : memref<4x1x32xf32, #tpu.memory_space<vmem>>, vector<4x1x32xf32>
    "tpu.trace_start"() <{level = 10 : i32, message = "kbd,kdo->kbo"}> : () -> ()
    %cst = arith.constant dense<0.000000e+00> : vector<4x4x32xf32>
    %3 = tpu.matmul %0, %1, %cst {dimension_numbers = #tpu.dot_dimension_numbers<[2], [1], [1], [2], [0, 0, 0, 1, 1, 2], [0], [0]>} : vector<4x4x16xf32>, vector<4x16x32xf32>, vector<4x4x32xf32> -> vector<4x4x32xf32>
    "tpu.trace_stop"() : () -> ()
    %4 = vector.broadcast %2 : vector<4x1x32xf32> to vector<4x4x32xf32>
    %5 = arith.mulf %3, %4 : vector<4x4x32xf32>
    %cst_8 = arith.constant 0.000000e+00 : f32
    %6 = vector.broadcast %cst_8 : f32 to vector<4x4x32xf32>
    %7 = arith.maximumf %5, %6 : vector<4x4x32xf32>
    %c0_9 = arith.constant 0 : index
    %c0_10 = arith.constant 0 : index
    %c0_11 = arith.constant 0 : index
    %8 = vector.load %arg5[%c0_9, %c0_10, %c0_11] : memref<4x32x32xf32, #tpu.memory_space<vmem>>, vector<4x32x32xf32>
    %c0_12 = arith.constant 0 : index
    %c0_13 = arith.constant 0 : index
    %c0_14 = arith.constant 0 : index
    %9 = vector.load %arg6[%c0_12, %c0_13, %c0_14] : memref<4x1x32xf32, #tpu.memory_space<vmem>>, vector<4x1x32xf32>
    "tpu.trace_start"() <{level = 10 : i32, message = "kbd,kdo->kbo"}> : () -> ()
    %cst_15 = arith.constant dense<0.000000e+00> : vector<4x4x32xf32>
    %10 = tpu.matmul %7, %8, %cst_15 {dimension_numbers = #tpu.dot_dimension_numbers<[2], [1], [1], [2], [0, 0, 0, 1, 1, 2], [0], [0]>} : vector<4x4x32xf32>, vector<4x32x32xf32>, vector<4x4x32xf32> -> vector<4x4x32xf32>
    "tpu.trace_stop"() : () -> ()
    %11 = vector.broadcast %9 : vector<4x1x32xf32> to vector<4x4x32xf32>
    %12 = arith.mulf %10, %11 : vector<4x4x32xf32>
    %cst_16 = arith.constant 0.000000e+00 : f32
    %13 = vector.broadcast %cst_16 : f32 to vector<4x4x32xf32>
    %14 = arith.maximumf %12, %13 : vector<4x4x32xf32>
    %c0_17 = arith.constant 0 : index
    %c0_18 = arith.constant 0 : index
    %c0_19 = arith.constant 0 : index
    %15 = vector.load %arg7[%c0_17, %c0_18, %c0_19] : memref<4x32x8xf32, #tpu.memory_space<vmem>>, vector<4x32x8xf32>
    %c0_20 = arith.constant 0 : index
    %c0_21 = arith.constant 0 : index
    %c0_22 = arith.constant 0 : index
    %16 = vector.load %arg8[%c0_20, %c0_21, %c0_22] : memref<4x1x8xf32, #tpu.memory_space<vmem>>, vector<4x1x8xf32>
    "tpu.trace_start"() <{level = 10 : i32, message = "kbd,kdo->kbo"}> : () -> ()
    %cst_23 = arith.constant dense<0.000000e+00> : vector<4x4x8xf32>
    %17 = tpu.matmul %14, %15, %cst_23 {dimension_numbers = #tpu.dot_dimension_numbers<[2], [1], [1], [2], [0, 0, 0, 1, 1, 2], [0], [0]>} : vector<4x4x32xf32>, vector<4x32x8xf32>, vector<4x4x8xf32> -> vector<4x4x8xf32>
    "tpu.trace_stop"() : () -> ()
    %18 = vector.broadcast %16 : vector<4x1x8xf32> to vector<4x4x8xf32>
    %19 = arith.mulf %17, %18 : vector<4x4x8xf32>
    %c0_24 = arith.constant 0 : index
    %c0_25 = arith.constant 0 : index
    %c0_26 = arith.constant 0 : index
    %20 = vector.load %arg9[%c0_24, %c0_25, %c0_26] : memref<4x4x8xf32, #tpu.memory_space<vmem>>, vector<4x4x8xf32>
    tpu.vector_store %arg9[%c0_24, %c0_25, %c0_26], %19 {strides = array<i32>} : memref<4x4x8xf32, #tpu.memory_space<vmem>>, vector<4x4x8xf32>,
    return
  }
  func.func @transform_0(%arg0: i32, %arg1: i32) -> (i32, i32, i32) {
    %c0_i32 = arith.constant 0 : i32
    %c0_i32_0 = arith.constant 0 : i32
    return %arg0, %arg1, %c0_i32 : i32, i32, i32
  }
  func.func @transform_1(%arg0: i32, %arg1: i32) -> (i32, i32, i32) {
    %c0_i32 = arith.constant 0 : i32
    %c0_i32_0 = arith.constant 0 : i32
    %c0_i32_1 = arith.constant 0 : i32
    return %arg0, %c0_i32, %c0_i32_0 : i32, i32, i32
  }
  func.func @transform_2(%arg0: i32, %arg1: i32) -> (i32, i32, i32) {
    %c0_i32 = arith.constant 0 : i32
    %c0_i32_0 = arith.constant 0 : i32
    %c0_i32_1 = arith.constant 0 : i32
    return %arg0, %c0_i32, %c0_i32_0 : i32, i32, i32
  }
  func.func @transform_3(%arg0: i32, %arg1: i32) -> (i32, i32, i32) {
    %c0_i32 = arith.constant 0 : i32
    %c0_i32_0 = arith.constant 0 : i32
    %c0_i32_1 = arith.constant 0 : i32
    return %arg0, %c0_i32, %c0_i32_0 : i32, i32, i32
  }
  func.func @transform_4(%arg0: i32, %arg1: i32) -> (i32, i32, i32) {
    %c0_i32 = arith.constant 0 : i32
    %c0_i32_0 = arith.constant 0 : i32
    %c0_i32_1 = arith.constant 0 : i32
    return %arg0, %c0_i32, %c0_i32_0 : i32, i32, i32
  }
  func.func @transform_5(%arg0: i32, %arg1: i32) -> (i32, i32, i32) {
    %c0_i32 = arith.constant 0 : i32
    %c0_i32_0 = arith.constant 0 : i32
    %c0_i32_1 = arith.constant 0 : i32
    return %arg0, %c0_i32, %c0_i32_0 : i32, i32, i32
  }
  func.func @transform_6(%arg0: i32, %arg1: i32) -> (i32, i32, i32) {
    %c0_i32 = arith.constant 0 : i32
    %c0_i32_0 = arith.constant 0 : i32
    %c0_i32_1 = arith.constant 0 : i32
    return %arg0, %c0_i32, %c0_i32_0 : i32, i32, i32
  }
  func.func @transform_7(%arg0: i32, %arg1: i32) -> (i32, i32, i32) {
    %c0_i32 = arith.constant 0 : i32
    %c0_i32_0 = arith.constant 0 : i32
    return %arg0, %arg1, %c0_i32 : i32, i32, i32
  }
}

</mosaic_0001>

<llo_original>
// kernel: tpu_custom_call.1
$region0: #{tpu_custom_call.1}
  #allocation0 [shape = 'u32[]', space=smem, size = 0x4, offset = 0x4, fixed_abs, tag = 'smem constant byte address 0x4 - core index']
  #allocation1 [shape = 'u32[144,128]{1,0:T(1,128)}', space=vmem, size = 0x12000, scoped, tag = 'internal scratch']
  %s0 = inlined_call_operand.vmem [shape: f32[4,4,16], index: 0, kind: input, shape index: {}]
  %s1 = inlined_call_operand.hbm [shape: f32[4,16,32], index: 1, kind: input, shape index: {}]
  %s2 = inlined_call_operand.vmem [shape: f32[4,1,32], index: 2, kind: input, shape index: {}]
  %s3 = inlined_call_operand.vmem [shape: f32[4,32,32], index: 3, kind: input, shape index: {}]
  %s4 = inlined_call_operand.vmem [shape: f32[4,1,32], index: 4, kind: input, shape index: {}]
  %s5 = inlined_call_operand.vmem [shape: f32[4,32,8], index: 5, kind: input, shape index: {}]
  %s6 = inlined_call_operand.vmem [shape: f32[4,1,8], index: 6, kind: input, shape index: {}]
  %s7 = inlined_call_operand.hbm [shape: f32[4,4,8], index: 7, kind: output, shape index: {}]
  %s8 = sld [smem:[#allocation0]]
  $region42: #{tpu_custom_call.1} parent=0
    _
  %s10 = ssub.s32 1, %s8
  %s11 = scalar_select 0, %s10, %s8
  $region1: #{tpu_custom_call.1} parent=0
    #allocation2 [shape = 'u8[32768]{0}', space=vmem, size = 0x8000, scoped, tag = 'input window, operand 1, single buffered']
    #allocation3 [shape = 's32[1]{0}', space=sflag, size = 0x4, scoped, tag = 'scoped memory for tpu_custom_call.1']
    #allocation4 [shape = 's32[1]{0}', space=sflag, size = 0x4, scoped, tag = 'scoped memory for tpu_custom_call.1']
    #allocation5 [shape = 'u8[8192]{0}', space=vmem, size = 0x2000, scoped, tag = 'output window, operand 0, single buffered']
    %12 = vsyncpa [#allocation3], 0
    %13 = vsyncpa [#allocation4], 0
    // Predicated region
    $region2: #{tpu_custom_call.1} parent=1 // pred_check
      _
    $region3: #{tpu_custom_call.1} parent=1 // pred_check_branch
      %15 = sbr.rel (0) target = $region5
    $region4: #{tpu_custom_call.1} parent=1 // pred_region
      _
    $region5: #{tpu_custom_call.1} parent=1 // pred_fallthru
      _
    // Predicated region
    $region6: #{tpu_custom_call.1} parent=1 // pred_check
      _
    $region7: #{tpu_custom_call.1} parent=1 // pred_check_branch
      %17 = sbr.rel (0) target = $region9
    $region8: #{tpu_custom_call.1} parent=1 // pred_region
      %s19 = ssub.s32 1024, 1024
      %20 = vsyncadd [#allocation3], %s19
      %s21 = sshll.u32 [#allocation2], 4
      %s22 = int_to_ptr.vmem [resolvable:$true] %s21
      %27 = dma.hbm_to_vmem [thread:$0]  %s1, 1024, %s22, [#allocation3], 128, 128, 8
    $region9: #{tpu_custom_call.1} parent=1 // pred_fallthru
      _
    // Predicated region
    $region10: #{tpu_custom_call.1} parent=1 // pred_check
      _
    $region11: #{tpu_custom_call.1} parent=1 // pred_check_branch
      %29 = sbr.rel (0) target = $region13
    $region12: #{tpu_custom_call.1} parent=1 // pred_region
      _
    $region13: #{tpu_custom_call.1} parent=1 // pred_fallthru
      _
    // Predicated region
    $region14: #{tpu_custom_call.1} parent=1 // pred_check
      _
    $region15: #{tpu_custom_call.1} parent=1 // pred_check_branch
      %31 = sbr.rel (0) target = $region17
    $region16: #{tpu_custom_call.1} parent=1 // pred_region
      _
    $region17: #{tpu_custom_call.1} parent=1 // pred_fallthru
      _
    // Predicated region
    $region18: #{tpu_custom_call.1} parent=1 // pred_check
      _
    $region19: #{tpu_custom_call.1} parent=1 // pred_check_branch
      %33 = sbr.rel (0) target = $region21
    $region20: #{tpu_custom_call.1} parent=1 // pred_region
      _
    $region21: #{tpu_custom_call.1} parent=1 // pred_fallthru
      _
    // Predicated region
    $region22: #{tpu_custom_call.1} parent=1 // pred_check
      _
    $region23: #{tpu_custom_call.1} parent=1 // pred_check_branch
      %35 = sbr.rel (0) target = $region25
    $region24: #{tpu_custom_call.1} parent=1 // pred_region
      _
    $region25: #{tpu_custom_call.1} parent=1 // pred_fallthru
      _
    // Predicated region
    $region26: #{tpu_custom_call.1} parent=1 // pred_check
      _
    $region27: #{tpu_custom_call.1} parent=1 // pred_check_branch
      %37 = sbr.rel (0) target = $region29
    $region28: #{tpu_custom_call.1} parent=1 // pred_region
      _
    $region29: #{tpu_custom_call.1} parent=1 // pred_fallthru
      _
    // Predicated region
    $region30: #{tpu_custom_call.1} parent=1 // pred_check
      _
    $region31: #{tpu_custom_call.1} parent=1 // pred_check_branch
      %39 = sbr.rel (0) target = $region33
    $region32: #{tpu_custom_call.1} parent=1 // pred_region
      %40 = dma.done [#allocation3], 1024
    $region33: #{tpu_custom_call.1} parent=1 // pred_fallthru
      _
    %v41 = vld [vmem:[%s0] sm:$0xf]
    %v42 = vld [vmem:[%s0 + $0x4] sm:$0xf]
    %v43 = vld [vmem:[%s0 + $0x8] sm:$0xf]
    %v44 = vld [vmem:[%s0 + $0xc] sm:$0xf]
    %v45 = vld [vmem:[#allocation2] sm:$0xff]
    %v46 = vld [vmem:[#allocation2 + $0x8] sm:$0xff]
    %v47 = vld [vmem:[#allocation2 + $0x10] sm:$0xff]
    %v48 = vld [vmem:[#allocation2 + $0x18] sm:$0xff]
    %v49 = vld [vmem:[#allocation2 + $0x20] sm:$0xff]
    %v50 = vld [vmem:[#allocation2 + $0x28] sm:$0xff]
    %v51 = vld [vmem:[#allocation2 + $0x30] sm:$0xff]
    %v52 = vld [vmem:[#allocation2 + $0x38] sm:$0xff]
    %v53 = vld [vmem:[%s2] sm:$0x1]
    %v54 = vld [vmem:[%s2 + $0x1] sm:$0x1]
    %v55 = vld [vmem:[%s2 + $0x2] sm:$0x1]
    %v56 = vld [vmem:[%s2 + $0x3] sm:$0x1]
    %vm57 = vcmask 130048
    %v59 = vsel %vm57, %v41, 0
    %61 = vmatprep.subr.mxu0 0.0
    %62 = vmatpush1.msra.mxu0 %v45
    %63 = vmatprep.subr.mxu0 0.0
    %64 = vmatpush1.msra.mxu0 %v46
    %65 = vmatprep.subr.mxu0 0.0
    %66 = vmatpush1.msra.mxu0 0.0
    %67 = vmatprep.subr.mxu0 0.0
    %68 = vmatpush1.msra.mxu0 0.0
    %69 = vmatprep.subr.mxu0 0.0
    %70 = vmatpush1.msra.mxu0 0.0
    %71 = vmatprep.subr.mxu0 0.0
    %72 = vmatpush1.msra.mxu0 0.0
    %73 = vmatprep.subr.mxu0 0.0
    %74 = vmatpush1.msra.mxu0 0.0
    %75 = vmatprep.subr.mxu0 0.0
    %76 = vmatpush1.msra.mxu0 0.0
    %77 = vmatprep.subr.mxu0 0.0
    %78 = vmatpush1.msra.mxu0 0.0
    %79 = vmatprep.subr.mxu0 0.0
    %80 = vmatpush1.msra.mxu0 0.0
    %81 = vmatprep.subr.mxu0 0.0
    %82 = vmatpush1.msra.mxu0 0.0
    %83 = vmatprep.subr.mxu0 0.0
    %84 = vmatpush1.msra.mxu0 0.0
    %85 = vmatprep.subr.mxu0 0.0
    %86 = vmatpush1.msra.mxu0 0.0
    %87 = vmatprep.subr.mxu0 0.0
    %88 = vmatpush1.msra.mxu0 0.0
    %89 = vmatprep.subr.mxu0 0.0
    %90 = vmatpush1.msra.mxu0 0.0
    %91 = vmatprep.subr.mxu0 0.0
    %92 = vmatpush1.msra.mxu0 0.0
    %93 = vmatprep.subr.mxu0 0.0
    %94 = vmatpush1.msra.mxu0 0.0
    %95 = vmatprep.subr.mxu0 0.0
    %96 = vmatpush1.msra.mxu0 0.0
    %97 = vmatprep.subr.mxu0 0.0
    %98 = vmatpush1.msra.mxu0 0.0
    %99 = vmatprep.subr.mxu0 0.0
    %100 = vmatpush1.msra.mxu0 0.0
    %101 = vmatprep.subr.mxu0 0.0
    %102 = vmatpush1.msra.mxu0 0.0
    %103 = vmatprep.subr.mxu0 0.0
    %104 = vmatpush1.msra.mxu0 0.0
    %105 = vmatprep.subr.mxu0 0.0
    %106 = vmatpush1.msra.mxu0 0.0
    %107 = vmatprep.subr.mxu0 0.0
    %108 = vmatpush1.msra.mxu0 0.0
    %109 = vmatprep.subr.mxu0 0.0
    %110 = vmatpush1.msra.mxu0 0.0
    %111 = vmatprep.subr.mxu0 0.0
    %112 = vmatpush1.msra.mxu0 0.0
    %113 = vmatprep.subr.mxu0 0.0
    %114 = vmatpush1.msra.mxu0 0.0
    %115 = vmatprep.subr.mxu0 0.0
    %116 = vmatpush1.msra.mxu0 0.0
    %117 = vmatprep.subr.mxu0 0.0
    %118 = vmatpush1.msra.mxu0 0.0
    %119 = vmatprep.subr.mxu0 0.0
    %120 = vmatpush1.msra.mxu0 0.0
    %121 = vmatprep.subr.mxu0 0.0
    %122 = vmatpush1.msra.mxu0 0.0
    %123 = vmatprep.subr.mxu0 0.0
    %124 = vmatpush1.msra.mxu0 0.0
    %125 = vmatprep.mubr.f32.mxu0 0.0
    %126 = vmatmul.mubr.f32.gmra.mrb[0].mxu0 %v59
    %v127 = vpop.f32.mrb[0].mxu0
    %v128 = vadd.f32 0.0, %v127
    %v129 = vpop.f32.mrb[0].mxu0
    %130 = vdwg.mxu0
    %v132 = vsel %vm57, %v42, 0
    %134 = vmatprep.subr.mxu0 0.0
    %135 = vmatpush1.msra.mxu0 %v47
    %136 = vmatprep.subr.mxu0 0.0
    %137 = vmatpush1.msra.mxu0 %v48
    %138 = vmatprep.subr.mxu0 0.0
    %139 = vmatpush1.msra.mxu0 0.0
    %140 = vmatprep.subr.mxu0 0.0
    %141 = vmatpush1.msra.mxu0 0.0
    %142 = vmatprep.subr.mxu0 0.0
    %143 = vmatpush1.msra.mxu0 0.0
    %144 = vmatprep.subr.mxu0 0.0
    %145 = vmatpush1.msra.mxu0 0.0
    %146 = vmatprep.subr.mxu0 0.0
    %147 = vmatpush1.msra.mxu0 0.0
    %148 = vmatprep.subr.mxu0 0.0
    %149 = vmatpush1.msra.mxu0 0.0
    %150 = vmatprep.subr.mxu0 0.0
    %151 = vmatpush1.msra.mxu0 0.0
    %152 = vmatprep.subr.mxu0 0.0
    %153 = vmatpush1.msra.mxu0 0.0
    %154 = vmatprep.subr.mxu0 0.0
    %155 = vmatpush1.msra.mxu0 0.0
    %156 = vmatprep.subr.mxu0 0.0
    %157 = vmatpush1.msra.mxu0 0.0
    %158 = vmatprep.subr.mxu0 0.0
    %159 = vmatpush1.msra.mxu0 0.0
    %160 = vmatprep.subr.mxu0 0.0
    %161 = vmatpush1.msra.mxu0 0.0
    %162 = vmatprep.subr.mxu0 0.0
    %163 = vmatpush1.msra.mxu0 0.0
    %164 = vmatprep.subr.mxu0 0.0
    %165 = vmatpush1.msra.mxu0 0.0
    %166 = vmatprep.subr.mxu0 0.0
    %167 = vmatpush1.msra.mxu0 0.0
    %168 = vmatprep.subr.mxu0 0.0
    %169 = vmatpush1.msra.mxu0 0.0
    %170 = vmatprep.subr.mxu0 0.0
    %171 = vmatpush1.msra.mxu0 0.0
    %172 = vmatprep.subr.mxu0 0.0
    %173 = vmatpush1.msra.mxu0 0.0
    %174 = vmatprep.subr.mxu0 0.0
    %175 = vmatpush1.msra.mxu0 0.0
    %176 = vmatprep.subr.mxu0 0.0
    %177 = vmatpush1.msra.mxu0 0.0
    %178 = vmatprep.subr.mxu0 0.0
    %179 = vmatpush1.msra.mxu0 0.0
    %180 = vmatprep.subr.mxu0 0.0
    %181 = vmatpush1.msra.mxu0 0.0
    %182 = vmatprep.subr.mxu0 0.0
    %183 = vmatpush1.msra.mxu0 0.0
    %184 = vmatprep.subr.mxu0 0.0
    %185 = vmatpush1.msra.mxu0 0.0
    %186 = vmatprep.subr.mxu0 0.0
    %187 = vmatpush1.msra.mxu0 0.0
    %188 = vmatprep.subr.mxu0 0.0
    %189 = vmatpush1.msra.mxu0 0.0
    %190 = vmatprep.subr.mxu0 0.0
    %191 = vmatpush1.msra.mxu0 0.0
    %192 = vmatprep.subr.mxu0 0.0
    %193 = vmatpush1.msra.mxu0 0.0
    %194 = vmatprep.subr.mxu0 0.0
    %195 = vmatpush1.msra.mxu0 0.0
    %196 = vmatprep.subr.mxu0 0.0
    %197 = vmatpush1.msra.mxu0 0.0
    %198 = vmatprep.mubr.f32.mxu0 0.0
    %199 = vmatmul.mubr.f32.gmra.mrb[0].mxu0 %v132
    %v200 = vpop.f32.mrb[0].mxu0
    %v201 = vadd.f32 0.0, %v200
    %v202 = vpop.f32.mrb[0].mxu0
    %203 = vdwg.mxu0
    %v205 = vsel %vm57, %v43, 0
    %207 = vmatprep.subr.mxu0 0.0
    %208 = vmatpush1.msra.mxu0 %v49
    %209 = vmatprep.subr.mxu0 0.0
    %210 = vmatpush1.msra.mxu0 %v50
    %211 = vmatprep.subr.mxu0 0.0
    %212 = vmatpush1.msra.mxu0 0.0
    %213 = vmatprep.subr.mxu0 0.0
    %214 = vmatpush1.msra.mxu0 0.0
    %215 = vmatprep.subr.mxu0 0.0
    %216 = vmatpush1.msra.mxu0 0.0
    %217 = vmatprep.subr.mxu0 0.0
    %218 = vmatpush1.msra.mxu0 0.0
    %219 = vmatprep.subr.mxu0 0.0
    %220 = vmatpush1.msra.mxu0 0.0
    %221 = vmatprep.subr.mxu0 0.0
    %222 = vmatpush1.msra.mxu0 0.0
    %223 = vmatprep.subr.mxu0 0.0
    %224 = vmatpush1.msra.mxu0 0.0
    %225 = vmatprep.subr.mxu0 0.0
    %226 = vmatpush1.msra.mxu0 0.0
    %227 = vmatprep.subr.mxu0 0.0
    %228 = vmatpush1.msra.mxu0 0.0
    %229 = vmatprep.subr.mxu0 0.0
    %230 = vmatpush1.msra.mxu0 0.0
    %231 = vmatprep.subr.mxu0 0.0
    %232 = vmatpush1.msra.mxu0 0.0
    %233 = vmatprep.subr.mxu0 0.0
    %234 = vmatpush1.msra.mxu0 0.0
    %235 = vmatprep.subr.mxu0 0.0
    %236 = vmatpush1.msra.mxu0 0.0
    %237 = vmatprep.subr.mxu0 0.0
    %238 = vmatpush1.msra.mxu0 0.0
    %239 = vmatprep.subr.mxu0 0.0
    %240 = vmatpush1.msra.mxu0 0.0
    %241 = vmatprep.subr.mxu0 0.0
    %242 = vmatpush1.msra.mxu0 0.0
    %243 = vmatprep.subr.mxu0 0.0
    %244 = vmatpush1.msra.mxu0 0.0
    %245 = vmatprep.subr.mxu0 0.0
    %246 = vmatpush1.msra.mxu0 0.0
    %247 = vmatprep.subr.mxu0 0.0
    %248 = vmatpush1.msra.mxu0 0.0
    %249 = vmatprep.subr.mxu0 0.0
    %250 = vmatpush1.msra.mxu0 0.0
    %251 = vmatprep.subr.mxu0 0.0
    %252 = vmatpush1.msra.mxu0 0.0
    %253 = vmatprep.subr.mxu0 0.0
    %254 = vmatpush1.msra.mxu0 0.0
    %255 = vmatprep.subr.mxu0 0.0
    %256 = vmatpush1.msra.mxu0 0.0
    %257 = vmatprep.subr.mxu0 0.0
    %258 = vmatpush1.msra.mxu0 0.0
    %259 = vmatprep.subr.mxu0 0.0
    %260 = vmatpush1.msra.mxu0 0.0
    %261 = vmatprep.subr.mxu0 0.0
    %262 = vmatpush1.msra.mxu0 0.0
    %263 = vmatprep.subr.mxu0 0.0
    %264 = vmatpush1.msra.mxu0 0.0
    %265 = vmatprep.subr.mxu0 0.0
    %266 = vmatpush1.msra.mxu0 0.0
    %267 = vmatprep.subr.mxu0 0.0
    %268 = vmatpush1.msra.mxu0 0.0
    %269 = vmatprep.subr.mxu0 0.0
    %270 = vmatpush1.msra.mxu0 0.0
    %271 = vmatprep.mubr.f32.mxu0 0.0
    %272 = vmatmul.mubr.f32.gmra.mrb[0].mxu0 %v205
    %v273 = vpop.f32.mrb[0].mxu0
    %v274 = vadd.f32 0.0, %v273
    %v275 = vpop.f32.mrb[0].mxu0
    %276 = vdwg.mxu0
    %v278 = vsel %vm57, %v44, 0
    %280 = vmatprep.subr.mxu0 0.0
    %281 = vmatpush1.msra.mxu0 %v51
    %282 = vmatprep.subr.mxu0 0.0
    %283 = vmatpush1.msra.mxu0 %v52
    %284 = vmatprep.subr.mxu0 0.0
    %285 = vmatpush1.msra.mxu0 0.0
    %286 = vmatprep.subr.mxu0 0.0
    %287 = vmatpush1.msra.mxu0 0.0
    %288 = vmatprep.subr.mxu0 0.0
    %289 = vmatpush1.msra.mxu0 0.0
    %290 = vmatprep.subr.mxu0 0.0
    %291 = vmatpush1.msra.mxu0 0.0
    %292 = vmatprep.subr.mxu0 0.0
    %293 = vmatpush1.msra.mxu0 0.0
    %294 = vmatprep.subr.mxu0 0.0
    %295 = vmatpush1.msra.mxu0 0.0
    %296 = vmatprep.subr.mxu0 0.0
    %297 = vmatpush1.msra.mxu0 0.0
    %298 = vmatprep.subr.mxu0 0.0
    %299 = vmatpush1.msra.mxu0 0.0
    %300 = vmatprep.subr.mxu0 0.0
    %301 = vmatpush1.msra.mxu0 0.0
    %302 = vmatprep.subr.mxu0 0.0
    %303 = vmatpush1.msra.mxu0 0.0
    %304 = vmatprep.subr.mxu0 0.0
    %305 = vmatpush1.msra.mxu0 0.0
    %306 = vmatprep.subr.mxu0 0.0
    %307 = vmatpush1.msra.mxu0 0.0
    %308 = vmatprep.subr.mxu0 0.0
    %309 = vmatpush1.msra.mxu0 0.0
    %310 = vmatprep.subr.mxu0 0.0
    %311 = vmatpush1.msra.mxu0 0.0
    %312 = vmatprep.subr.mxu0 0.0
    %313 = vmatpush1.msra.mxu0 0.0
    %314 = vmatprep.subr.mxu0 0.0
    %315 = vmatpush1.msra.mxu0 0.0
    %316 = vmatprep.subr.mxu0 0.0
    %317 = vmatpush1.msra.mxu0 0.0
    %318 = vmatprep.subr.mxu0 0.0
    %319 = vmatpush1.msra.mxu0 0.0
    %320 = vmatprep.subr.mxu0 0.0
    %321 = vmatpush1.msra.mxu0 0.0
    %322 = vmatprep.subr.mxu0 0.0
    %323 = vmatpush1.msra.mxu0 0.0
    %324 = vmatprep.subr.mxu0 0.0
    %325 = vmatpush1.msra.mxu0 0.0
    %326 = vmatprep.subr.mxu0 0.0
    %327 = vmatpush1.msra.mxu0 0.0
    %328 = vmatprep.subr.mxu0 0.0
    %329 = vmatpush1.msra.mxu0 0.0
    %330 = vmatprep.subr.mxu0 0.0
    %331 = vmatpush1.msra.mxu0 0.0
    %332 = vmatprep.subr.mxu0 0.0
    %333 = vmatpush1.msra.mxu0 0.0
    %334 = vmatprep.subr.mxu0 0.0
    %335 = vmatpush1.msra.mxu0 0.0
    %336 = vmatprep.subr.mxu0 0.0
    %337 = vmatpush1.msra.mxu0 0.0
    %338 = vmatprep.subr.mxu0 0.0
    %339 = vmatpush1.msra.mxu0 0.0
    %340 = vmatprep.subr.mxu0 0.0
    %341 = vmatpush1.msra.mxu0 0.0
    %342 = vmatprep.subr.mxu0 0.0
    %343 = vmatpush1.msra.mxu0 0.0
    %344 = vmatprep.mubr.f32.mxu0 0.0
    %345 = vmatmul.mubr.f32.gmra.mrb[0].mxu0 %v278
    %v346 = vpop.f32.mrb[0].mxu0
    %v347 = vadd.f32 0.0, %v346
    %v348 = vpop.f32.mrb[0].mxu0
    %349 = vdwg.mxu0
    %v354 = vlaneseq
    %v355 = vshrl.u32 %v354, 7
    %v356 = vsub.s32 0, %v355
    %v357 = vrot.slane %v53, %v356
    %v358 = vlaneseq
    %v359 = vshrl.u32 %v358, 7
    %v360 = vsub.s32 0, %v359
    %v361 = vrot.slane %v54, %v360
    %v362 = vlaneseq
    %v363 = vshrl.u32 %v362, 7
    %v364 = vsub.s32 0, %v363
    %v365 = vrot.slane %v55, %v364
    %v366 = vlaneseq
    %v367 = vshrl.u32 %v366, 7
    %v368 = vsub.s32 0, %v367
    %v369 = vrot.slane %v56, %v368
    %v374 = vmul.f32 %v128, %v357
    %v375 = vmul.f32 %v201, %v361
    %v376 = vmul.f32 %v274, %v365
    %v377 = vmul.f32 %v347, %v369
    %v378 = vmax.f32 %v374, 0.0
    %v379 = vmax.f32 %v375, 0.0
    %v380 = vmax.f32 %v376, 0.0
    %v381 = vmax.f32 %v377, 0.0
    %v382 = vld [vmem:[%s3] sm:$0xff]
    %v383 = vld [vmem:[%s3 + $0x8] sm:$0xff]
    %v384 = vld [vmem:[%s3 + $0x10] sm:$0xff]
    %v385 = vld [vmem:[%s3 + $0x18] sm:$0xff]
    %v386 = vld [vmem:[%s3 + $0x20] sm:$0xff]
    %v387 = vld [vmem:[%s3 + $0x28] sm:$0xff]
    %v388 = vld [vmem:[%s3 + $0x30] sm:$0xff]
    %v389 = vld [vmem:[%s3 + $0x38] sm:$0xff]
    %v390 = vld [vmem:[%s3 + $0x40] sm:$0xff]
    %v391 = vld [vmem:[%s3 + $0x48] sm:$0xff]
    %v392 = vld [vmem:[%s3 + $0x50] sm:$0xff]
    %v393 = vld [vmem:[%s3 + $0x58] sm:$0xff]
    %v394 = vld [vmem:[%s3 + $0x60] sm:$0xff]
    %v395 = vld [vmem:[%s3 + $0x68] sm:$0xff]
    %v396 = vld [vmem:[%s3 + $0x70] sm:$0xff]
    %v397 = vld [vmem:[%s3 + $0x78] sm:$0xff]
    %v398 = vld [vmem:[%s4] sm:$0x1]
    %v399 = vld [vmem:[%s4 + $0x1] sm:$0x1]
    %v400 = vld [vmem:[%s4 + $0x2] sm:$0x1]
    %v401 = vld [vmem:[%s4 + $0x3] sm:$0x1]
    %vm402 = vcmask 261120
    %v404 = vsel %vm402, %v378, 0
    %406 = vmatprep.subr.mxu0 0.0
    %407 = vmatpush1.msra.mxu0 %v382
    %408 = vmatprep.subr.mxu0 0.0
    %409 = vmatpush1.msra.mxu0 %v383
    %410 = vmatprep.subr.mxu0 0.0
    %411 = vmatpush1.msra.mxu0 %v384
    %412 = vmatprep.subr.mxu0 0.0
    %413 = vmatpush1.msra.mxu0 %v385
    %414 = vmatprep.subr.mxu0 0.0
    %415 = vmatpush1.msra.mxu0 0.0
    %416 = vmatprep.subr.mxu0 0.0
    %417 = vmatpush1.msra.mxu0 0.0
    %418 = vmatprep.subr.mxu0 0.0
    %419 = vmatpush1.msra.mxu0 0.0
    %420 = vmatprep.subr.mxu0 0.0
    %421 = vmatpush1.msra.mxu0 0.0
    %422 = vmatprep.subr.mxu0 0.0
    %423 = vmatpush1.msra.mxu0 0.0
    %424 = vmatprep.subr.mxu0 0.0
    %425 = vmatpush1.msra.mxu0 0.0
    %426 = vmatprep.subr.mxu0 0.0
    %427 = vmatpush1.msra.mxu0 0.0
    %428 = vmatprep.subr.mxu0 0.0
    %429 = vmatpush1.msra.mxu0 0.0
    %430 = vmatprep.subr.mxu0 0.0
    %431 = vmatpush1.msra.mxu0 0.0
    %432 = vmatprep.subr.mxu0 0.0
    %433 = vmatpush1.msra.mxu0 0.0
    %434 = vmatprep.subr.mxu0 0.0
    %435 = vmatpush1.msra.mxu0 0.0
    %436 = vmatprep.subr.mxu0 0.0
    %437 = vmatpush1.msra.mxu0 0.0
    %438 = vmatprep.subr.mxu0 0.0
    %439 = vmatpush1.msra.mxu0 0.0
    %440 = vmatprep.subr.mxu0 0.0
    %441 = vmatpush1.msra.mxu0 0.0
    %442 = vmatprep.subr.mxu0 0.0
    %443 = vmatpush1.msra.mxu0 0.0
    %444 = vmatprep.subr.mxu0 0.0
    %445 = vmatpush1.msra.mxu0 0.0
    %446 = vmatprep.subr.mxu0 0.0
    %447 = vmatpush1.msra.mxu0 0.0
    %448 = vmatprep.subr.mxu0 0.0
    %449 = vmatpush1.msra.mxu0 0.0
    %450 = vmatprep.subr.mxu0 0.0
    %451 = vmatpush1.msra.mxu0 0.0
    %452 = vmatprep.subr.mxu0 0.0
    %453 = vmatpush1.msra.mxu0 0.0
    %454 = vmatprep.subr.mxu0 0.0
    %455 = vmatpush1.msra.mxu0 0.0
    %456 = vmatprep.subr.mxu0 0.0
    %457 = vmatpush1.msra.mxu0 0.0
    %458 = vmatprep.subr.mxu0 0.0
    %459 = vmatpush1.msra.mxu0 0.0
    %460 = vmatprep.subr.mxu0 0.0
    %461 = vmatpush1.msra.mxu0 0.0
    %462 = vmatprep.subr.mxu0 0.0
    %463 = vmatpush1.msra.mxu0 0.0
    %464 = vmatprep.subr.mxu0 0.0
    %465 = vmatpush1.msra.mxu0 0.0
    %466 = vmatprep.subr.mxu0 0.0
    %467 = vmatpush1.msra.mxu0 0.0
    %468 = vmatprep.subr.mxu0 0.0
    %469 = vmatpush1.msra.mxu0 0.0
    %470 = vmatprep.mubr.f32.mxu0 0.0
    %471 = vmatmul.mubr.f32.gmra.mrb[0].mxu0 %v404
    %v472 = vpop.f32.mrb[0].mxu0
    %v473 = vadd.f32 0.0, %v472
    %v474 = vpop.f32.mrb[0].mxu0
    %475 = vdwg.mxu0
    %v477 = vsel %vm402, %v379, 0
    %479 = vmatprep.subr.mxu0 0.0
    %480 = vmatpush1.msra.mxu0 %v386
    %481 = vmatprep.subr.mxu0 0.0
    %482 = vmatpush1.msra.mxu0 %v387
    %483 = vmatprep.subr.mxu0 0.0
    %484 = vmatpush1.msra.mxu0 %v388
    %485 = vmatprep.subr.mxu0 0.0
    %486 = vmatpush1.msra.mxu0 %v389
    %487 = vmatprep.subr.mxu0 0.0
    %488 = vmatpush1.msra.mxu0 0.0
    %489 = vmatprep.subr.mxu0 0.0
    %490 = vmatpush1.msra.mxu0 0.0
    %491 = vmatprep.subr.mxu0 0.0
    %492 = vmatpush1.msra.mxu0 0.0
    %493 = vmatprep.subr.mxu0 0.0
    %494 = vmatpush1.msra.mxu0 0.0
    %495 = vmatprep.subr.mxu0 0.0
    %496 = vmatpush1.msra.mxu0 0.0
    %497 = vmatprep.subr.mxu0 0.0
    %498 = vmatpush1.msra.mxu0 0.0
    %499 = vmatprep.subr.mxu0 0.0
    %500 = vmatpush1.msra.mxu0 0.0
    %501 = vmatprep.subr.mxu0 0.0
    %502 = vmatpush1.msra.mxu0 0.0
    %503 = vmatprep.subr.mxu0 0.0
    %504 = vmatpush1.msra.mxu0 0.0
    %505 = vmatprep.subr.mxu0 0.0
    %506 = vmatpush1.msra.mxu0 0.0
    %507 = vmatprep.subr.mxu0 0.0
    %508 = vmatpush1.msra.mxu0 0.0
    %509 = vmatprep.subr.mxu0 0.0
    %510 = vmatpush1.msra.mxu0 0.0
    %511 = vmatprep.subr.mxu0 0.0
    %512 = vmatpush1.msra.mxu0 0.0
    %513 = vmatprep.subr.mxu0 0.0
    %514 = vmatpush1.msra.mxu0 0.0
    %515 = vmatprep.subr.mxu0 0.0
    %516 = vmatpush1.msra.mxu0 0.0
    %517 = vmatprep.subr.mxu0 0.0
    %518 = vmatpush1.msra.mxu0 0.0
    %519 = vmatprep.subr.mxu0 0.0
    %520 = vmatpush1.msra.mxu0 0.0
    %521 = vmatprep.subr.mxu0 0.0
    %522 = vmatpush1.msra.mxu0 0.0
    %523 = vmatprep.subr.mxu0 0.0
    %524 = vmatpush1.msra.mxu0 0.0
    %525 = vmatprep.subr.mxu0 0.0
    %526 = vmatpush1.msra.mxu0 0.0
    %527 = vmatprep.subr.mxu0 0.0
    %528 = vmatpush1.msra.mxu0 0.0
    %529 = vmatprep.subr.mxu0 0.0
    %530 = vmatpush1.msra.mxu0 0.0
    %531 = vmatprep.subr.mxu0 0.0
    %532 = vmatpush1.msra.mxu0 0.0
    %533 = vmatprep.subr.mxu0 0.0
    %534 = vmatpush1.msra.mxu0 0.0
    %535 = vmatprep.subr.mxu0 0.0
    %536 = vmatpush1.msra.mxu0 0.0
    %537 = vmatprep.subr.mxu0 0.0
    %538 = vmatpush1.msra.mxu0 0.0
    %539 = vmatprep.subr.mxu0 0.0
    %540 = vmatpush1.msra.mxu0 0.0
    %541 = vmatprep.subr.mxu0 0.0
    %542 = vmatpush1.msra.mxu0 0.0
    %543 = vmatprep.mubr.f32.mxu0 0.0
    %544 = vmatmul.mubr.f32.gmra.mrb[0].mxu0 %v477
    %v545 = vpop.f32.mrb[0].mxu0
    %v546 = vadd.f32 0.0, %v545
    %v547 = vpop.f32.mrb[0].mxu0
    %548 = vdwg.mxu0
    %v550 = vsel %vm402, %v380, 0
    %552 = vmatprep.subr.mxu0 0.0
    %553 = vmatpush1.msra.mxu0 %v390
    %554 = vmatprep.subr.mxu0 0.0
    %555 = vmatpush1.msra.mxu0 %v391
    %556 = vmatprep.subr.mxu0 0.0
    %557 = vmatpush1.msra.mxu0 %v392
    %558 = vmatprep.subr.mxu0 0.0
    %559 = vmatpush1.msra.mxu0 %v393
    %560 = vmatprep.subr.mxu0 0.0
    %561 = vmatpush1.msra.mxu0 0.0
    %562 = vmatprep.subr.mxu0 0.0
    %563 = vmatpush1.msra.mxu0 0.0
    %564 = vmatprep.subr.mxu0 0.0
    %565 = vmatpush1.msra.mxu0 0.0
    %566 = vmatprep.subr.mxu0 0.0
    %567 = vmatpush1.msra.mxu0 0.0
    %568 = vmatprep.subr.mxu0 0.0
    %569 = vmatpush1.msra.mxu0 0.0
    %570 = vmatprep.subr.mxu0 0.0
    %571 = vmatpush1.msra.mxu0 0.0
    %572 = vmatprep.subr.mxu0 0.0
    %573 = vmatpush1.msra.mxu0 0.0
    %574 = vmatprep.subr.mxu0 0.0
    %575 = vmatpush1.msra.mxu0 0.0
    %576 = vmatprep.subr.mxu0 0.0
    %577 = vmatpush1.msra.mxu0 0.0
    %578 = vmatprep.subr.mxu0 0.0
    %579 = vmatpush1.msra.mxu0 0.0
    %580 = vmatprep.subr.mxu0 0.0
    %581 = vmatpush1.msra.mxu0 0.0
    %582 = vmatprep.subr.mxu0 0.0
    %583 = vmatpush1.msra.mxu0 0.0
    %584 = vmatprep.subr.mxu0 0.0
    %585 = vmatpush1.msra.mxu0 0.0
    %586 = vmatprep.subr.mxu0 0.0
    %587 = vmatpush1.msra.mxu0 0.0
    %588 = vmatprep.subr.mxu0 0.0
    %589 = vmatpush1.msra.mxu0 0.0
    %590 = vmatprep.subr.mxu0 0.0
    %591 = vmatpush1.msra.mxu0 0.0
    %592 = vmatprep.subr.mxu0 0.0
    %593 = vmatpush1.msra.mxu0 0.0
    %594 = vmatprep.subr.mxu0 0.0
    %595 = vmatpush1.msra.mxu0 0.0
    %596 = vmatprep.subr.mxu0 0.0
    %597 = vmatpush1.msra.mxu0 0.0
    %598 = vmatprep.subr.mxu0 0.0
    %599 = vmatpush1.msra.mxu0 0.0
    %600 = vmatprep.subr.mxu0 0.0
    %601 = vmatpush1.msra.mxu0 0.0
    %602 = vmatprep.subr.mxu0 0.0
    %603 = vmatpush1.msra.mxu0 0.0
    %604 = vmatprep.subr.mxu0 0.0
    %605 = vmatpush1.msra.mxu0 0.0
    %606 = vmatprep.subr.mxu0 0.0
    %607 = vmatpush1.msra.mxu0 0.0
    %608 = vmatprep.subr.mxu0 0.0
    %609 = vmatpush1.msra.mxu0 0.0
    %610 = vmatprep.subr.mxu0 0.0
    %611 = vmatpush1.msra.mxu0 0.0
    %612 = vmatprep.subr.mxu0 0.0
    %613 = vmatpush1.msra.mxu0 0.0
    %614 = vmatprep.subr.mxu0 0.0
    %615 = vmatpush1.msra.mxu0 0.0
    %616 = vmatprep.mubr.f32.mxu0 0.0
    %617 = vmatmul.mubr.f32.gmra.mrb[0].mxu0 %v550
    %v618 = vpop.f32.mrb[0].mxu0
    %v619 = vadd.f32 0.0, %v618
    %v620 = vpop.f32.mrb[0].mxu0
    %621 = vdwg.mxu0
    %v623 = vsel %vm402, %v381, 0
    %625 = vmatprep.subr.mxu0 0.0
    %626 = vmatpush1.msra.mxu0 %v394
    %627 = vmatprep.subr.mxu0 0.0
    %628 = vmatpush1.msra.mxu0 %v395
    %629 = vmatprep.subr.mxu0 0.0
    %630 = vmatpush1.msra.mxu0 %v396
    %631 = vmatprep.subr.mxu0 0.0
    %632 = vmatpush1.msra.mxu0 %v397
    %633 = vmatprep.subr.mxu0 0.0
    %634 = vmatpush1.msra.mxu0 0.0
    %635 = vmatprep.subr.mxu0 0.0
    %636 = vmatpush1.msra.mxu0 0.0
    %637 = vmatprep.subr.mxu0 0.0
    %638 = vmatpush1.msra.mxu0 0.0
    %639 = vmatprep.subr.mxu0 0.0
    %640 = vmatpush1.msra.mxu0 0.0
    %641 = vmatprep.subr.mxu0 0.0
    %642 = vmatpush1.msra.mxu0 0.0
    %643 = vmatprep.subr.mxu0 0.0
    %644 = vmatpush1.msra.mxu0 0.0
    %645 = vmatprep.subr.mxu0 0.0
    %646 = vmatpush1.msra.mxu0 0.0
    %647 = vmatprep.subr.mxu0 0.0
    %648 = vmatpush1.msra.mxu0 0.0
    %649 = vmatprep.subr.mxu0 0.0
    %650 = vmatpush1.msra.mxu0 0.0
    %651 = vmatprep.subr.mxu0 0.0
    %652 = vmatpush1.msra.mxu0 0.0
    %653 = vmatprep.subr.mxu0 0.0
    %654 = vmatpush1.msra.mxu0 0.0
    %655 = vmatprep.subr.mxu0 0.0
    %656 = vmatpush1.msra.mxu0 0.0
    %657 = vmatprep.subr.mxu0 0.0
    %658 = vmatpush1.msra.mxu0 0.0
    %659 = vmatprep.subr.mxu0 0.0
    %660 = vmatpush1.msra.mxu0 0.0
    %661 = vmatprep.subr.mxu0 0.0
    %662 = vmatpush1.msra.mxu0 0.0
    %663 = vmatprep.subr.mxu0 0.0
    %664 = vmatpush1.msra.mxu0 0.0
    %665 = vmatprep.subr.mxu0 0.0
    %666 = vmatpush1.msra.mxu0 0.0
    %667 = vmatprep.subr.mxu0 0.0
    %668 = vmatpush1.msra.mxu0 0.0
    %669 = vmatprep.subr.mxu0 0.0
    %670 = vmatpush1.msra.mxu0 0.0
    %671 = vmatprep.subr.mxu0 0.0
    %672 = vmatpush1.msra.mxu0 0.0
    %673 = vmatprep.subr.mxu0 0.0
    %674 = vmatpush1.msra.mxu0 0.0
    %675 = vmatprep.subr.mxu0 0.0
    %676 = vmatpush1.msra.mxu0 0.0
    %677 = vmatprep.subr.mxu0 0.0
    %678 = vmatpush1.msra.mxu0 0.0
    %679 = vmatprep.subr.mxu0 0.0
    %680 = vmatpush1.msra.mxu0 0.0
    %681 = vmatprep.subr.mxu0 0.0
    %682 = vmatpush1.msra.mxu0 0.0
    %683 = vmatprep.subr.mxu0 0.0
    %684 = vmatpush1.msra.mxu0 0.0
    %685 = vmatprep.subr.mxu0 0.0
    %686 = vmatpush1.msra.mxu0 0.0
    %687 = vmatprep.subr.mxu0 0.0
    %688 = vmatpush1.msra.mxu0 0.0
    %689 = vmatprep.mubr.f32.mxu0 0.0
    %690 = vmatmul.mubr.f32.gmra.mrb[0].mxu0 %v623
    %v691 = vpop.f32.mrb[0].mxu0
    %v692 = vadd.f32 0.0, %v691
    %v693 = vpop.f32.mrb[0].mxu0
    %694 = vdwg.mxu0
    %v699 = vlaneseq
    %v700 = vshrl.u32 %v699, 7
    %v701 = vsub.s32 0, %v700
    %v702 = vrot.slane %v398, %v701
    %v703 = vlaneseq
    %v704 = vshrl.u32 %v703, 7
    %v705 = vsub.s32 0, %v704
    %v706 = vrot.slane %v399, %v705
    %v707 = vlaneseq
    %v708 = vshrl.u32 %v707, 7
    %v709 = vsub.s32 0, %v708
    %v710 = vrot.slane %v400, %v709
    %v711 = vlaneseq
    %v712 = vshrl.u32 %v711, 7
    %v713 = vsub.s32 0, %v712
    %v714 = vrot.slane %v401, %v713
    %v719 = vmul.f32 %v473, %v702
    %v720 = vmul.f32 %v546, %v706
    %v721 = vmul.f32 %v619, %v710
    %v722 = vmul.f32 %v692, %v714
    %v723 = vmax.f32 %v719, 0.0
    %v724 = vmax.f32 %v720, 0.0
    %v725 = vmax.f32 %v721, 0.0
    %v726 = vmax.f32 %v722, 0.0
    %v727 = vld [vmem:[%s5] sm:$0xff]
    %v728 = vld [vmem:[%s5 + $0x8] sm:$0xff]
    %v729 = vld [vmem:[%s5 + $0x10] sm:$0xff]
    %v730 = vld [vmem:[%s5 + $0x18] sm:$0xff]
    %v731 = vld [vmem:[%s5 + $0x20] sm:$0xff]
    %v732 = vld [vmem:[%s5 + $0x28] sm:$0xff]
    %v733 = vld [vmem:[%s5 + $0x30] sm:$0xff]
    %v734 = vld [vmem:[%s5 + $0x38] sm:$0xff]
    %v735 = vld [vmem:[%s5 + $0x40] sm:$0xff]
    %v736 = vld [vmem:[%s5 + $0x48] sm:$0xff]
    %v737 = vld [vmem:[%s5 + $0x50] sm:$0xff]
    %v738 = vld [vmem:[%s5 + $0x58] sm:$0xff]
    %v739 = vld [vmem:[%s5 + $0x60] sm:$0xff]
    %v740 = vld [vmem:[%s5 + $0x68] sm:$0xff]
    %v741 = vld [vmem:[%s5 + $0x70] sm:$0xff]
    %v742 = vld [vmem:[%s5 + $0x78] sm:$0xff]
    %v743 = vld [vmem:[%s6] sm:$0x1]
    %v744 = vld [vmem:[%s6 + $0x1] sm:$0x1]
    %v745 = vld [vmem:[%s6 + $0x2] sm:$0x1]
    %v746 = vld [vmem:[%s6 + $0x3] sm:$0x1]
    %v748 = vsel %vm402, %v723, 0
    %750 = vmatprep.subr.mxu0 0.0
    %751 = vmatpush1.msra.mxu0 %v727
    %752 = vmatprep.subr.mxu0 0.0
    %753 = vmatpush1.msra.mxu0 %v728
    %754 = vmatprep.subr.mxu0 0.0
    %755 = vmatpush1.msra.mxu0 %v729
    %756 = vmatprep.subr.mxu0 0.0
    %757 = vmatpush1.msra.mxu0 %v730
    %758 = vmatprep.subr.mxu0 0.0
    %759 = vmatpush1.msra.mxu0 0.0
    %760 = vmatprep.subr.mxu0 0.0
    %761 = vmatpush1.msra.mxu0 0.0
    %762 = vmatprep.subr.mxu0 0.0
    %763 = vmatpush1.msra.mxu0 0.0
    %764 = vmatprep.subr.mxu0 0.0
    %765 = vmatpush1.msra.mxu0 0.0
    %766 = vmatprep.subr.mxu0 0.0
    %767 = vmatpush1.msra.mxu0 0.0
    %768 = vmatprep.subr.mxu0 0.0
    %769 = vmatpush1.msra.mxu0 0.0
    %770 = vmatprep.subr.mxu0 0.0
    %771 = vmatpush1.msra.mxu0 0.0
    %772 = vmatprep.subr.mxu0 0.0
    %773 = vmatpush1.msra.mxu0 0.0
    %774 = vmatprep.subr.mxu0 0.0
    %775 = vmatpush1.msra.mxu0 0.0
    %776 = vmatprep.subr.mxu0 0.0
    %777 = vmatpush1.msra.mxu0 0.0
    %778 = vmatprep.subr.mxu0 0.0
    %779 = vmatpush1.msra.mxu0 0.0
    %780 = vmatprep.subr.mxu0 0.0
    %781 = vmatpush1.msra.mxu0 0.0
    %782 = vmatprep.subr.mxu0 0.0
    %783 = vmatpush1.msra.mxu0 0.0
    %784 = vmatprep.subr.mxu0 0.0
    %785 = vmatpush1.msra.mxu0 0.0
    %786 = vmatprep.subr.mxu0 0.0
    %787 = vmatpush1.msra.mxu0 0.0
    %788 = vmatprep.subr.mxu0 0.0
    %789 = vmatpush1.msra.mxu0 0.0
    %790 = vmatprep.subr.mxu0 0.0
    %791 = vmatpush1.msra.mxu0 0.0
    %792 = vmatprep.subr.mxu0 0.0
    %793 = vmatpush1.msra.mxu0 0.0
    %794 = vmatprep.subr.mxu0 0.0
    %795 = vmatpush1.msra.mxu0 0.0
    %796 = vmatprep.subr.mxu0 0.0
    %797 = vmatpush1.msra.mxu0 0.0
    %798 = vmatprep.subr.mxu0 0.0
    %799 = vmatpush1.msra.mxu0 0.0
    %800 = vmatprep.subr.mxu0 0.0
    %801 = vmatpush1.msra.mxu0 0.0
    %802 = vmatprep.subr.mxu0 0.0
    %803 = vmatpush1.msra.mxu0 0.0
    %804 = vmatprep.subr.mxu0 0.0
    %805 = vmatpush1.msra.mxu0 0.0
    %806 = vmatprep.subr.mxu0 0.0
    %807 = vmatpush1.msra.mxu0 0.0
    %808 = vmatprep.subr.mxu0 0.0
    %809 = vmatpush1.msra.mxu0 0.0
    %810 = vmatprep.subr.mxu0 0.0
    %811 = vmatpush1.msra.mxu0 0.0
    %812 = vmatprep.subr.mxu0 0.0
    %813 = vmatpush1.msra.mxu0 0.0
    %814 = vmatprep.mubr.f32.mxu0 0.0
    %815 = vmatmul.mubr.f32.gmra.mrb[0].mxu0 %v748
    %v816 = vpop.f32.mrb[0].mxu0
    %v817 = vadd.f32 0.0, %v816
    %v818 = vpop.f32.mrb[0].mxu0
    %819 = vdwg.mxu0
    %v821 = vsel %vm402, %v724, 0
    %823 = vmatprep.subr.mxu0 0.0
    %824 = vmatpush1.msra.mxu0 %v731
    %825 = vmatprep.subr.mxu0 0.0
    %826 = vmatpush1.msra.mxu0 %v732
    %827 = vmatprep.subr.mxu0 0.0
    %828 = vmatpush1.msra.mxu0 %v733
    %829 = vmatprep.subr.mxu0 0.0
    %830 = vmatpush1.msra.mxu0 %v734
    %831 = vmatprep.subr.mxu0 0.0
    %832 = vmatpush1.msra.mxu0 0.0
    %833 = vmatprep.subr.mxu0 0.0
    %834 = vmatpush1.msra.mxu0 0.0
    %835 = vmatprep.subr.mxu0 0.0
    %836 = vmatpush1.msra.mxu0 0.0
    %837 = vmatprep.subr.mxu0 0.0
    %838 = vmatpush1.msra.mxu0 0.0
    %839 = vmatprep.subr.mxu0 0.0
    %840 = vmatpush1.msra.mxu0 0.0
    %841 = vmatprep.subr.mxu0 0.0
    %842 = vmatpush1.msra.mxu0 0.0
    %843 = vmatprep.subr.mxu0 0.0
    %844 = vmatpush1.msra.mxu0 0.0
    %845 = vmatprep.subr.mxu0 0.0
    %846 = vmatpush1.msra.mxu0 0.0
    %847 = vmatprep.subr.mxu0 0.0
    %848 = vmatpush1.msra.mxu0 0.0
    %849 = vmatprep.subr.mxu0 0.0
    %850 = vmatpush1.msra.mxu0 0.0
    %851 = vmatprep.subr.mxu0 0.0
    %852 = vmatpush1.msra.mxu0 0.0
    %853 = vmatprep.subr.mxu0 0.0
    %854 = vmatpush1.msra.mxu0 0.0
    %855 = vmatprep.subr.mxu0 0.0
    %856 = vmatpush1.msra.mxu0 0.0
    %857 = vmatprep.subr.mxu0 0.0
    %858 = vmatpush1.msra.mxu0 0.0
    %859 = vmatprep.subr.mxu0 0.0
    %860 = vmatpush1.msra.mxu0 0.0
    %861 = vmatprep.subr.mxu0 0.0
    %862 = vmatpush1.msra.mxu0 0.0
    %863 = vmatprep.subr.mxu0 0.0
    %864 = vmatpush1.msra.mxu0 0.0
    %865 = vmatprep.subr.mxu0 0.0
    %866 = vmatpush1.msra.mxu0 0.0
    %867 = vmatprep.subr.mxu0 0.0
    %868 = vmatpush1.msra.mxu0 0.0
    %869 = vmatprep.subr.mxu0 0.0
    %870 = vmatpush1.msra.mxu0 0.0
    %871 = vmatprep.subr.mxu0 0.0
    %872 = vmatpush1.msra.mxu0 0.0
    %873 = vmatprep.subr.mxu0 0.0
    %874 = vmatpush1.msra.mxu0 0.0
    %875 = vmatprep.subr.mxu0 0.0
    %876 = vmatpush1.msra.mxu0 0.0
    %877 = vmatprep.subr.mxu0 0.0
    %878 = vmatpush1.msra.mxu0 0.0
    %879 = vmatprep.subr.mxu0 0.0
    %880 = vmatpush1.msra.mxu0 0.0
    %881 = vmatprep.subr.mxu0 0.0
    %882 = vmatpush1.msra.mxu0 0.0
    %883 = vmatprep.subr.mxu0 0.0
    %884 = vmatpush1.msra.mxu0 0.0
    %885 = vmatprep.subr.mxu0 0.0
    %886 = vmatpush1.msra.mxu0 0.0
    %887 = vmatprep.mubr.f32.mxu0 0.0
    %888 = vmatmul.mubr.f32.gmra.mrb[0].mxu0 %v821
    %v889 = vpop.f32.mrb[0].mxu0
    %v890 = vadd.f32 0.0, %v889
    %v891 = vpop.f32.mrb[0].mxu0
    %892 = vdwg.mxu0
    %v894 = vsel %vm402, %v725, 0
    %896 = vmatprep.subr.mxu0 0.0
    %897 = vmatpush1.msra.mxu0 %v735
    %898 = vmatprep.subr.mxu0 0.0
    %899 = vmatpush1.msra.mxu0 %v736
    %900 = vmatprep.subr.mxu0 0.0
    %901 = vmatpush1.msra.mxu0 %v737
    %902 = vmatprep.subr.mxu0 0.0
    %903 = vmatpush1.msra.mxu0 %v738
    %904 = vmatprep.subr.mxu0 0.0
    %905 = vmatpush1.msra.mxu0 0.0
    %906 = vmatprep.subr.mxu0 0.0
    %907 = vmatpush1.msra.mxu0 0.0
    %908 = vmatprep.subr.mxu0 0.0
    %909 = vmatpush1.msra.mxu0 0.0
    %910 = vmatprep.subr.mxu0 0.0
    %911 = vmatpush1.msra.mxu0 0.0
    %912 = vmatprep.subr.mxu0 0.0
    %913 = vmatpush1.msra.mxu0 0.0
    %914 = vmatprep.subr.mxu0 0.0
    %915 = vmatpush1.msra.mxu0 0.0
    %916 = vmatprep.subr.mxu0 0.0
    %917 = vmatpush1.msra.mxu0 0.0
    %918 = vmatprep.subr.mxu0 0.0
    %919 = vmatpush1.msra.mxu0 0.0
    %920 = vmatprep.subr.mxu0 0.0
    %921 = vmatpush1.msra.mxu0 0.0
    %922 = vmatprep.subr.mxu0 0.0
    %923 = vmatpush1.msra.mxu0 0.0
    %924 = vmatprep.subr.mxu0 0.0
    %925 = vmatpush1.msra.mxu0 0.0
    %926 = vmatprep.subr.mxu0 0.0
    %927 = vmatpush1.msra.mxu0 0.0
    %928 = vmatprep.subr.mxu0 0.0
    %929 = vmatpush1.msra.mxu0 0.0
    %930 = vmatprep.subr.mxu0 0.0
    %931 = vmatpush1.msra.mxu0 0.0
    %932 = vmatprep.subr.mxu0 0.0
    %933 = vmatpush1.msra.mxu0 0.0
    %934 = vmatprep.subr.mxu0 0.0
    %935 = vmatpush1.msra.mxu0 0.0
    %936 = vmatprep.subr.mxu0 0.0
    %937 = vmatpush1.msra.mxu0 0.0
    %938 = vmatprep.subr.mxu0 0.0
    %939 = vmatpush1.msra.mxu0 0.0
    %940 = vmatprep.subr.mxu0 0.0
    %941 = vmatpush1.msra.mxu0 0.0
    %942 = vmatprep.subr.mxu0 0.0
    %943 = vmatpush1.msra.mxu0 0.0
    %944 = vmatprep.subr.mxu0 0.0
    %945 = vmatpush1.msra.mxu0 0.0
    %946 = vmatprep.subr.mxu0 0.0
    %947 = vmatpush1.msra.mxu0 0.0
    %948 = vmatprep.subr.mxu0 0.0
    %949 = vmatpush1.msra.mxu0 0.0
    %950 = vmatprep.subr.mxu0 0.0
    %951 = vmatpush1.msra.mxu0 0.0
    %952 = vmatprep.subr.mxu0 0.0
    %953 = vmatpush1.msra.mxu0 0.0
    %954 = vmatprep.subr.mxu0 0.0
    %955 = vmatpush1.msra.mxu0 0.0
    %956 = vmatprep.subr.mxu0 0.0
    %957 = vmatpush1.msra.mxu0 0.0
    %958 = vmatprep.subr.mxu0 0.0
    %959 = vmatpush1.msra.mxu0 0.0
    %960 = vmatprep.mubr.f32.mxu0 0.0
    %961 = vmatmul.mubr.f32.gmra.mrb[0].mxu0 %v894
    %v962 = vpop.f32.mrb[0].mxu0
    %v963 = vadd.f32 0.0, %v962
    %v964 = vpop.f32.mrb[0].mxu0
    %965 = vdwg.mxu0
    %v967 = vsel %vm402, %v726, 0
    %969 = vmatprep.subr.mxu0 0.0
    %970 = vmatpush1.msra.mxu0 %v739
    %971 = vmatprep.subr.mxu0 0.0
    %972 = vmatpush1.msra.mxu0 %v740
    %973 = vmatprep.subr.mxu0 0.0
    %974 = vmatpush1.msra.mxu0 %v741
    %975 = vmatprep.subr.mxu0 0.0
    %976 = vmatpush1.msra.mxu0 %v742
    %977 = vmatprep.subr.mxu0 0.0
    %978 = vmatpush1.msra.mxu0 0.0
    %979 = vmatprep.subr.mxu0 0.0
    %980 = vmatpush1.msra.mxu0 0.0
    %981 = vmatprep.subr.mxu0 0.0
    %982 = vmatpush1.msra.mxu0 0.0
    %983 = vmatprep.subr.mxu0 0.0
    %984 = vmatpush1.msra.mxu0 0.0
    %985 = vmatprep.subr.mxu0 0.0
    %986 = vmatpush1.msra.mxu0 0.0
    %987 = vmatprep.subr.mxu0 0.0
    %988 = vmatpush1.msra.mxu0 0.0
    %989 = vmatprep.subr.mxu0 0.0
    %990 = vmatpush1.msra.mxu0 0.0
    %991 = vmatprep.subr.mxu0 0.0
    %992 = vmatpush1.msra.mxu0 0.0
    %993 = vmatprep.subr.mxu0 0.0
    %994 = vmatpush1.msra.mxu0 0.0
    %995 = vmatprep.subr.mxu0 0.0
    %996 = vmatpush1.msra.mxu0 0.0
    %997 = vmatprep.subr.mxu0 0.0
    %998 = vmatpush1.msra.mxu0 0.0
    %999 = vmatprep.subr.mxu0 0.0
    %1000 = vmatpush1.msra.mxu0 0.0
    %1001 = vmatprep.subr.mxu0 0.0
    %1002 = vmatpush1.msra.mxu0 0.0
    %1003 = vmatprep.subr.mxu0 0.0
    %1004 = vmatpush1.msra.mxu0 0.0
    %1005 = vmatprep.subr.mxu0 0.0
    %1006 = vmatpush1.msra.mxu0 0.0
    %1007 = vmatprep.subr.mxu0 0.0
    %1008 = vmatpush1.msra.mxu0 0.0
    %1009 = vmatprep.subr.mxu0 0.0
    %1010 = vmatpush1.msra.mxu0 0.0
    %1011 = vmatprep.subr.mxu0 0.0
    %1012 = vmatpush1.msra.mxu0 0.0
    %1013 = vmatprep.subr.mxu0 0.0
    %1014 = vmatpush1.msra.mxu0 0.0
    %1015 = vmatprep.subr.mxu0 0.0
    %1016 = vmatpush1.msra.mxu0 0.0
    %1017 = vmatprep.subr.mxu0 0.0
    %1018 = vmatpush1.msra.mxu0 0.0
    %1019 = vmatprep.subr.mxu0 0.0
    %1020 = vmatpush1.msra.mxu0 0.0
    %1021 = vmatprep.subr.mxu0 0.0
    %1022 = vmatpush1.msra.mxu0 0.0
    %1023 = vmatprep.subr.mxu0 0.0
    %1024 = vmatpush1.msra.mxu0 0.0
    %1025 = vmatprep.subr.mxu0 0.0
    %1026 = vmatpush1.msra.mxu0 0.0
    %1027 = vmatprep.subr.mxu0 0.0
    %1028 = vmatpush1.msra.mxu0 0.0
    %1029 = vmatprep.subr.mxu0 0.0
    %1030 = vmatpush1.msra.mxu0 0.0
    %1031 = vmatprep.subr.mxu0 0.0
    %1032 = vmatpush1.msra.mxu0 0.0
    %1033 = vmatprep.mubr.f32.mxu0 0.0
    %1034 = vmatmul.mubr.f32.gmra.mrb[0].mxu0 %v967
    %v1035 = vpop.f32.mrb[0].mxu0
    %v1036 = vadd.f32 0.0, %v1035
    %v1037 = vpop.f32.mrb[0].mxu0
    %1038 = vdwg.mxu0
    %v1043 = vlaneseq
    %v1044 = vshrl.u32 %v1043, 7
    %v1045 = vsub.s32 0, %v1044
    %v1046 = vrot.slane %v743, %v1045
    %v1047 = vlaneseq
    %v1048 = vshrl.u32 %v1047, 7
    %v1049 = vsub.s32 0, %v1048
    %v1050 = vrot.slane %v744, %v1049
    %v1051 = vlaneseq
    %v1052 = vshrl.u32 %v1051, 7
    %v1053 = vsub.s32 0, %v1052
    %v1054 = vrot.slane %v745, %v1053
    %v1055 = vlaneseq
    %v1056 = vshrl.u32 %v1055, 7
    %v1057 = vsub.s32 0, %v1056
    %v1058 = vrot.slane %v746, %v1057
    %v1063 = vmul.f32 %v817, %v1046
    %v1064 = vmul.f32 %v890, %v1050
    %v1065 = vmul.f32 %v963, %v1054
    %v1066 = vmul.f32 %v1036, %v1058
    %vm1067 = vcmask 60416
    %1068 = vst.msk [vmem:[#allocation5] sm:$0xf] %vm1067, %v1063
    %1069 = vst.msk [vmem:[#allocation5 + $0x4] sm:$0xf] %vm1067, %v1064
    %1070 = vst.msk [vmem:[#allocation5 + $0x8] sm:$0xf] %vm1067, %v1065
    %1071 = vst.msk [vmem:[#allocation5 + $0xc] sm:$0xf] %vm1067, %v1066
    // Predicated region
    $region34: #{tpu_custom_call.1} parent=1 // pred_check
      _
    $region35: #{tpu_custom_call.1} parent=1 // pred_check_branch
      %1073 = sbr.rel (0) target = $region37
    $region36: #{tpu_custom_call.1} parent=1 // pred_region
      %s1075 = ssub.s32 256, 256
      %1076 = vsyncadd [#allocation4], %s1075
      %s1077 = sshll.u32 [#allocation5], 4
      %s1078 = int_to_ptr.vmem [resolvable:$true] %s1077
      %1083 = dma.vmem_to_hbm [thread:$0]  %s1078, 256, %s7, [#allocation4], 64, 64, 4
    $region37: #{tpu_custom_call.1} parent=1 // pred_fallthru
      _
    // Predicated region
    $region38: #{tpu_custom_call.1} parent=1 // pred_check
      _
    $region39: #{tpu_custom_call.1} parent=1 // pred_check_branch
      %1085 = sbr.rel (0) target = $region41
    $region40: #{tpu_custom_call.1} parent=1 // pred_region
      %1086 = dma.done [#allocation4], 256
    $region41: #{tpu_custom_call.1} parent=1 // pred_fallthru
      _
    %1087 = vsyncpa [#allocation3], 1
    %1088 = vsyncpa [#allocation4], 1

</llo_original>
